<compile_context>
chip_gen: v6e
topology: v6e:2x2x1
jax: 0.10.0
libtpu: 0.0.40
codegen_flags: <defaults>
</compile_context>

<pallas_src>
import functools
import math

import jax
import jax.numpy as jnp
from jax import lax
from jax.experimental import pallas as pl
from jax.experimental.pallas import tpu as pltpu


def _store_heads(y, base, out_ref, h, d_k):
    """Scatter D contiguous output features of y into head-major out_ref[0, hd]."""
    for hd in range(h):
        lo = base + hd * d_k
        out_ref[0, hd] = y[:, lo:lo + d_k].astype(out_ref.dtype)


def _qkv_proj_fused_kernel(x_ref, w_ref, b_ref, q_out, k_out, v_out, *, h, d_k):
    # x_ref: (1, ts, D) bf16; w_ref: (D, 3D) bf16 (in, out), scale folded into Q cols.
    D = h * d_k
    x = x_ref[0]
    y = jnp.dot(x, w_ref[...], preferred_element_type=jnp.float32) + b_ref[...]
    _store_heads(y, 0, q_out, h, d_k)          # Q (already scaled by 1/sqrt(d_k))
    _store_heads(y, D, k_out, h, d_k)          # K
    _store_heads(y, 2 * D, v_out, h, d_k)      # V


def _qkv_proj_general_kernel(xq_ref, xk_ref, xv_ref, w_ref, b_ref,
                             q_out, k_out, v_out, *, h, d_k):
    # Cross-attention fallback: three activations, one fused (D, 3D) weight.
    D = h * d_k
    outs = (q_out, k_out, v_out)
    for j, x_ref in enumerate((xq_ref, xk_ref, xv_ref)):
        w_j = w_ref[:, j * D:(j + 1) * D]
        b_j = b_ref[:, j * D:(j + 1) * D]
        y = jnp.dot(x_ref[0], w_j, preferred_element_type=jnp.float32) + b_j
        _store_heads(y, 0, outs[j], h, d_k)


def _attention_kernel(q_ref, k_ref, v_ref, mask_ref, wo_ref, bo_ref,
                      out_ref, ctx_ref, *, h, d_k):
    # q_ref: (1, h, tq, d_k) bf16 (pre-scaled); k/v_ref: (1, h, S, d_k) bf16.
    # Additive mask bias: 0 where key valid, -1e9 where masked (f32).
    bias = (mask_ref[0] - 1.0) * jnp.float32(1e9)       # (1, S)

    for hd in range(h):                 # static unroll; head views are free
        q_h = q_ref[0, hd]              # (tq, d_k)
        k_h = k_ref[0, hd]              # (S,  d_k)
        v_h = v_ref[0, hd]              # (S,  d_k)

        # scores = q_h @ k_h^T: contract last dims directly (NT matmul).
        s = lax.dot_general(q_h, k_h, (((1,), (1,)), ((), ())),
                            preferred_element_type=jnp.float32)     # (tq, S)
        s = s + bias

        s_max = jnp.max(s, axis=-1, keepdims=True)
        p = jnp.exp(s - s_max)
        p_sum = jnp.sum(p, axis=-1, keepdims=True)
        p = p * pl.reciprocal(p_sum, approx=True)                   # EUP slot

        # Per-head context goes straight into the (tq, D) f32 VMEM scratch.
        ctx_ref[:, hd * d_k:(hd + 1) * d_k] = jnp.dot(
            p.astype(v_h.dtype), v_h, preferred_element_type=jnp.float32)

    ctx = ctx_ref[...].astype(wo_ref.dtype)                          # (tq, D) bf16
    out = jnp.dot(ctx, wo_ref[...], preferred_element_type=jnp.float32) + bo_ref[...]
    out_ref[0] = out.astype(out_ref.dtype)


def multi_headed_attention(query, key, value, mask, params, *, h,
                           q_tile=256, s_tile=512):
    """query/key/value: (B, S, D) float32.  mask: (B, 1, S, S), (B, S) or None.

    Returns (B, S, D) in query.dtype.  Matches the PyTorch module in eval mode.
    """
    B, S, D = query.shape
    assert D % h == 0
    d_k = D // h
    scale = 1.0 / math.sqrt(d_k)

    wq, bq, wk, bk, wv, bv, wo, bo = params

    # Host-side weight prep: fold the 1/sqrt(d_k) scale into the Q projection,
    # transpose PyTorch-layout (out, in) -> (in, out), fuse Q|K|V, cast bf16.
    wqkv = jnp.concatenate([(wq * scale).T, wk.T, wv.T], axis=1).astype(jnp.bfloat16)
    bqkv = jnp.concatenate([bq * scale, bk, bv]).reshape(1, 3 * D).astype(jnp.float32)
    wo_t = wo.T.astype(jnp.bfloat16)
    bo2 = bo.reshape(1, D).astype(jnp.float32)

    # Collapse the broadcast BERT mask to per-key validity (B, 1, S) f32.
    if mask is None:
        key_valid = jnp.ones((B, 1, S), jnp.float32)
    elif mask.ndim == 4:
        key_valid = (mask[:, 0, 0, :] != 0).astype(jnp.float32).reshape(B, 1, S)
    else:
        key_valid = (mask.reshape(B, S) != 0).astype(jnp.float32).reshape(B, 1, S)

    def pick_tile(size, want):
        return want if (size >= want and size % want == 0) else size

    ts = pick_tile(S, s_tile)     # seq tile for the projection kernel
    tq = pick_tile(S, q_tile)     # query tile for the attention kernel

    compiler_params = pltpu.CompilerParams(
        dimension_semantics=("parallel", "parallel"),
        vmem_limit_bytes=48 * 1024 * 1024,
    )

    # ---------------- Kernel 1: fused QKV projection (head-major out) -------
    hm_shape = jax.ShapeDtypeStruct((B, h, S, d_k), jnp.bfloat16)
    seq_spec = pl.BlockSpec((1, ts, D), lambda b, i: (b, i, 0))
    w_spec = pl.BlockSpec((D, 3 * D), lambda b, i: (0, 0))
    b_spec = pl.BlockSpec((1, 3 * D), lambda b, i: (0, 0))
    hm_spec = pl.BlockSpec((1, h, ts, d_k), lambda b, i: (b, 0, i, 0))

    self_attention = (query is key) and (key is value)

    if self_attention:
        x = query.astype(jnp.bfloat16)
        proj_cost = pl.CostEstimate(
            flops=2 * B * S * D * 3 * D,
            transcendentals=0,
            bytes_accessed=(B * S * D * 2            # single activation read
                            + 3 * D * D * 2 + 3 * D * 4
                            + 3 * B * S * D * 2),    # head-major Q/K/V writes
        )
        qh, kh, vh = pl.pallas_call(
            functools.partial(_qkv_proj_fused_kernel, h=h, d_k=d_k),
            out_shape=(hm_shape,) * 3,
            grid_spec=pltpu.PrefetchScalarGridSpec(
                num_scalar_prefetch=0,
                grid=(B, S // ts),
                in_specs=[seq_spec, w_spec, b_spec],
                out_specs=(hm_spec,) * 3,
            ),
            compiler_params=compiler_params,
            cost_estimate=proj_cost,
        )(x, wqkv, bqkv)
    else:
        xq = query.astype(jnp.bfloat16)
        xk = key.astype(jnp.bfloat16)
        xv = value.astype(jnp.bfloat16)
        proj_cost = pl.CostEstimate(
            flops=2 * B * S * D * 3 * D,
            transcendentals=0,
            bytes_accessed=(3 * B * S * D * 2
                            + 3 * D * D * 2 + 3 * D * 4
                            + 3 * B * S * D * 2),
        )
        qh, kh, vh = pl.pallas_call(
            functools.partial(_qkv_proj_general_kernel, h=h, d_k=d_k),
            out_shape=(hm_shape,) * 3,
            grid_spec=pltpu.PrefetchScalarGridSpec(
                num_scalar_prefetch=0,
                grid=(B, S // ts),
                in_specs=[seq_spec, seq_spec, seq_spec, w_spec, b_spec],
                out_specs=(hm_spec,) * 3,
            ),
            compiler_params=compiler_params,
            cost_estimate=proj_cost,
        )(xq, xk, xv, wqkv, bqkv)

    # ----------- Kernel 2: per-head attention + output projection -----------
    q_spec = pl.BlockSpec((1, h, tq, d_k), lambda b, qi: (b, 0, qi, 0))
    kv_spec = pl.BlockSpec((1, h, S, d_k), lambda b, qi: (b, 0, 0, 0))
    mask_spec = pl.BlockSpec((1, 1, S), lambda b, qi: (b, 0, 0))
    wo_spec = pl.BlockSpec((D, D), lambda b, qi: (0, 0))
    bo_spec = pl.BlockSpec((1, D), lambda b, qi: (0, 0))
    out_spec = pl.BlockSpec((1, tq, D), lambda b, qi: (b, qi, 0))

    attn_cost = pl.CostEstimate(
        flops=B * (4 * S * S * D + 2 * S * D * D),
        transcendentals=B * h * S * S,
        bytes_accessed=(3 * B * S * D * 2 + B * S * D * 4 + B * S * 4
                        + D * D * 2 + D * 4),
    )

    out = pl.pallas_call(
        functools.partial(_attention_kernel, h=h, d_k=d_k),
        out_shape=jax.ShapeDtypeStruct((B, S, D), query.dtype),
        grid_spec=pltpu.PrefetchScalarGridSpec(
            num_scalar_prefetch=0,
            grid=(B, S // tq),
            in_specs=[q_spec, kv_spec, kv_spec, mask_spec, wo_spec, bo_spec],
            out_specs=out_spec,
            scratch_shapes=[pltpu.VMEM((tq, D), jnp.float32)],
        ),
        compiler_params=compiler_params,
        cost_estimate=attn_cost,
    )(qh, kh, vh, key_valid, wo_t, bo2)

    return out


def _reference(query, key, value, mask, params, *, h):
    """Pure-JAX f32 reference mirroring the PyTorch forward (eval mode)."""
    B, S, D = query.shape
    d_k = D // h
    wq, bq, wk, bk, wv, bv, wo, bo = params

    def proj(x, w, b):
        return x @ w.T + b

    def split(x):  # (B,S,D) -> (B,h,S,d_k)
        return x.reshape(B, S, h, d_k).transpose(0, 2, 1, 3)

    q = split(proj(query, wq, bq))
    k = split(proj(key, wk, bk))
    v = split(proj(value, wv, bv))
    scores = jnp.einsum('bhqd,bhkd->bhqk', q, k) / math.sqrt(d_k)
    scores = jnp.where(mask == 0, -1e9, scores)
    p = jax.nn.softmax(scores, axis=-1)
    ctx = jnp.einsum('bhqk,bhkd->bhqd', p, v)
    ctx = ctx.transpose(0, 2, 1, 3).reshape(B, S, D)
    return ctx @ wo.T + bo


if __name__ == "__main__":
    # Small, BERT-consistent shapes.
    B, S, D, H = 2, 8, 32, 4

    key0 = jax.random.PRNGKey(0)
    ks = jax.random.split(key0, 12)

    w_scale = 1.0 / math.sqrt(D)
    params = (
        jax.random.uniform(ks[0], (D, D), jnp.float32, -w_scale, w_scale),  # Wq
        jax.random.uniform(ks[1], (D,), jnp.float32, -w_scale, w_scale),    # bq
        jax.random.uniform(ks[2], (D, D), jnp.float32, -w_scale, w_scale),  # Wk
        jax.random.uniform(ks[3], (D,), jnp.float32, -w_scale, w_scale),    # bk
        jax.random.uniform(ks[4], (D, D), jnp.float32, -w_scale, w_scale),  # Wv
        jax.random.uniform(ks[5], (D,), jnp.float32, -w_scale, w_scale),    # bv
        jax.random.uniform(ks[6], (D, D), jnp.float32, -w_scale, w_scale),  # Wo
        jax.random.uniform(ks[7], (D,), jnp.float32, -w_scale, w_scale),    # bo
    )

    x = jax.random.normal(ks[8], (B, S, D), jnp.float32)
    query2 = jax.random.normal(ks[9], (B, S, D), jnp.float32)
    key2 = jax.random.normal(ks[10], (B, S, D), jnp.float32)
    value2 = jax.random.normal(ks[11], (B, S, D), jnp.float32)

    # Padding-style mask (B, 1, S, S): batch 1 has the last 2 key positions masked.
    key_valid = jnp.ones((B, S), jnp.float32).at[1, -2:].set(0.0)
    mask = key_valid[:, None, None, :] * jnp.ones((B, 1, S, S), jnp.float32)

    # 1) Self-attention (the BERT case): exercises the fused single-activation path.
    out_self = multi_headed_attention(x, x, x, mask, params, h=H)
    out_self = jax.block_until_ready(out_self)
    ref_self = _reference(x, x, x, mask, params, h=H)
    assert out_self.shape == (B, S, D)
    assert jnp.allclose(out_self, ref_self, atol=5e-2, rtol=5e-2), \
        "self-attention mismatch vs. reference"

    # 2) Cross-attention (distinct q/k/v): exercises the general fallback path.
    out_x = multi_headed_attention(query2, key2, value2, mask, params, h=H)
    out_x = jax.block_until_ready(out_x)
    ref_x = _reference(query2, key2, value2, mask, params, h=H)
    assert jnp.allclose(out_x, ref_x, atol=5e-2, rtol=5e-2), \
        "cross-attention mismatch vs. reference"

    print("KERNEL_OK")
</pallas_src>

<mosaic_0001>
module attributes {stable_mosaic.version = 11 : i64} {
  func.func @_qkv_proj_fused_kernel(%arg0: i32, %arg1: i32, %arg2: memref<1x8x32xbf16, #tpu.memory_space<vmem>>, %arg3: memref<32x96xbf16, #tpu.memory_space<vmem>>, %arg4: memref<1x96xf32, #tpu.memory_space<vmem>>, %arg5: memref<1x4x8x8xbf16, #tpu.memory_space<vmem>>, %arg6: memref<1x4x8x8xbf16, #tpu.memory_space<vmem>>, %arg7: memref<1x4x8x8xbf16, #tpu.memory_space<vmem>>) attributes {dimension_semantics = [#tpu.dimension_semantics<parallel>, #tpu.dimension_semantics<parallel>], iteration_bounds = array<i64: 2, 1>, scalar_prefetch = 0 : i64, scratch_operands = 0 : i64, tpu.core_type = #tpu.core_type<tc>, window_params = [{transform_indices = @transform_0, window_bounds = array<i64: 1, 8, 32>}, {pipeline_mode = #tpu.pipeline_mode<synchronous>, transform_indices = @transform_1, window_bounds = array<i64: 32, 96>}, {pipeline_mode = #tpu.pipeline_mode<synchronous>, transform_indices = @transform_2, window_bounds = array<i64: 1, 96>}, {transform_indices = @transform_3, window_bounds = array<i64: 1, 4, 8, 8>}, {transform_indices = @transform_4, window_bounds = array<i64: 1, 4, 8, 8>}, {transform_indices = @transform_5, window_bounds = array<i64: 1, 4, 8, 8>}]} {
    %c0 = arith.constant 0 : index
    %c0_0 = arith.constant 0 : index
    %c0_1 = arith.constant 0 : index
    %0 = vector.load %arg2[%c0, %c0_0, %c0_1] : memref<1x8x32xbf16, #tpu.memory_space<vmem>>, vector<1x8x32xbf16>
    %1 = vector.shape_cast %0 : vector<1x8x32xbf16> to vector<8x32xbf16>
    %c0_2 = arith.constant 0 : index
    %c0_3 = arith.constant 0 : index
    %2 = vector.load %arg3[%c0_2, %c0_3] : memref<32x96xbf16, #tpu.memory_space<vmem>>, vector<32x96xbf16>
    %cst = arith.constant dense<0.000000e+00> : vector<8x96xf32>
    %3 = tpu.matmul %1, %2, %cst {dimension_numbers = #tpu.dot_dimension_numbers<[1], [0], [0], [1], [0, 0, 1, 1], [], []>} : vector<8x32xbf16>, vector<32x96xbf16>, vector<8x96xf32> -> vector<8x96xf32>
    %c0_4 = arith.constant 0 : index
    %c0_5 = arith.constant 0 : index
    %4 = vector.load %arg4[%c0_4, %c0_5] : memref<1x96xf32, #tpu.memory_space<vmem>>, vector<1x96xf32>
    %5 = vector.broadcast %4 : vector<1x96xf32> to vector<8x96xf32>
    %6 = arith.addf %3, %5 : vector<8x96xf32>
    %7 = vector.extract_strided_slice %6 {offsets = [0, 0], sizes = [8, 8], strides = [1, 1]} : vector<8x96xf32> to vector<8x8xf32>
    %8 = arith.truncf %7 : vector<8x8xf32> to vector<8x8xbf16>
    %c0_6 = arith.constant 0 : index
    %c0_7 = arith.constant 0 : index
    %c0_8 = arith.constant 0 : index
    %c0_9 = arith.constant 0 : index
    %9 = vector.load %arg5[%c0_6, %c0_7, %c0_8, %c0_9] : memref<1x4x8x8xbf16, #tpu.memory_space<vmem>>, vector<1x1x8x8xbf16>
    %10 = vector.shape_cast %9 : vector<1x1x8x8xbf16> to vector<8x8xbf16>
    %11 = vector.shape_cast %8 : vector<8x8xbf16> to vector<1x1x8x8xbf16>
    tpu.vector_store %arg5[%c0_6, %c0_7, %c0_8, %c0_9], %11 {strides = array<i32>} : memref<1x4x8x8xbf16, #tpu.memory_space<vmem>>, vector<1x1x8x8xbf16>,
    %12 = vector.extract_strided_slice %6 {offsets = [0, 8], sizes = [8, 8], strides = [1, 1]} : vector<8x96xf32> to vector<8x8xf32>
    %13 = arith.truncf %12 : vector<8x8xf32> to vector<8x8xbf16>
    %c0_10 = arith.constant 0 : index
    %c1 = arith.constant 1 : index
    %c0_11 = arith.constant 0 : index
    %c0_12 = arith.constant 0 : index
    %14 = vector.load %arg5[%c0_10, %c1, %c0_11, %c0_12] : memref<1x4x8x8xbf16, #tpu.memory_space<vmem>>, vector<1x1x8x8xbf16>
    %15 = vector.shape_cast %14 : vector<1x1x8x8xbf16> to vector<8x8xbf16>
    %16 = vector.shape_cast %13 : vector<8x8xbf16> to vector<1x1x8x8xbf16>
    tpu.vector_store %arg5[%c0_10, %c1, %c0_11, %c0_12], %16 {strides = array<i32>} : memref<1x4x8x8xbf16, #tpu.memory_space<vmem>>, vector<1x1x8x8xbf16>,
    %17 = vector.extract_strided_slice %6 {offsets = [0, 16], sizes = [8, 8], strides = [1, 1]} : vector<8x96xf32> to vector<8x8xf32>
    %18 = arith.truncf %17 : vector<8x8xf32> to vector<8x8xbf16>
    %c0_13 = arith.constant 0 : index
    %c2 = arith.constant 2 : index
    %c0_14 = arith.constant 0 : index
    %c0_15 = arith.constant 0 : index
    %19 = vector.load %arg5[%c0_13, %c2, %c0_14, %c0_15] : memref<1x4x8x8xbf16, #tpu.memory_space<vmem>>, vector<1x1x8x8xbf16>
    %20 = vector.shape_cast %19 : vector<1x1x8x8xbf16> to vector<8x8xbf16>
    %21 = vector.shape_cast %18 : vector<8x8xbf16> to vector<1x1x8x8xbf16>
    tpu.vector_store %arg5[%c0_13, %c2, %c0_14, %c0_15], %21 {strides = array<i32>} : memref<1x4x8x8xbf16, #tpu.memory_space<vmem>>, vector<1x1x8x8xbf16>,
    %22 = vector.extract_strided_slice %6 {offsets = [0, 24], sizes = [8, 8], strides = [1, 1]} : vector<8x96xf32> to vector<8x8xf32>
    %23 = arith.truncf %22 : vector<8x8xf32> to vector<8x8xbf16>
    %c0_16 = arith.constant 0 : index
    %c3 = arith.constant 3 : index
    %c0_17 = arith.constant 0 : index
    %c0_18 = arith.constant 0 : index
    %24 = vector.load %arg5[%c0_16, %c3, %c0_17, %c0_18] : memref<1x4x8x8xbf16, #tpu.memory_space<vmem>>, vector<1x1x8x8xbf16>
    %25 = vector.shape_cast %24 : vector<1x1x8x8xbf16> to vector<8x8xbf16>
    %26 = vector.shape_cast %23 : vector<8x8xbf16> to vector<1x1x8x8xbf16>
    tpu.vector_store %arg5[%c0_16, %c3, %c0_17, %c0_18], %26 {strides = array<i32>} : memref<1x4x8x8xbf16, #tpu.memory_space<vmem>>, vector<1x1x8x8xbf16>,
    %27 = vector.extract_strided_slice %6 {offsets = [0, 32], sizes = [8, 8], strides = [1, 1]} : vector<8x96xf32> to vector<8x8xf32>
    %28 = arith.truncf %27 : vector<8x8xf32> to vector<8x8xbf16>
    %c0_19 = arith.constant 0 : index
    %c0_20 = arith.constant 0 : index
    %c0_21 = arith.constant 0 : index
    %c0_22 = arith.constant 0 : index
    %29 = vector.load %arg6[%c0_19, %c0_20, %c0_21, %c0_22] : memref<1x4x8x8xbf16, #tpu.memory_space<vmem>>, vector<1x1x8x8xbf16>
    %30 = vector.shape_cast %29 : vector<1x1x8x8xbf16> to vector<8x8xbf16>
    %31 = vector.shape_cast %28 : vector<8x8xbf16> to vector<1x1x8x8xbf16>
    tpu.vector_store %arg6[%c0_19, %c0_20, %c0_21, %c0_22], %31 {strides = array<i32>} : memref<1x4x8x8xbf16, #tpu.memory_space<vmem>>, vector<1x1x8x8xbf16>,
    %32 = vector.extract_strided_slice %6 {offsets = [0, 40], sizes = [8, 8], strides = [1, 1]} : vector<8x96xf32> to vector<8x8xf32>
    %33 = arith.truncf %32 : vector<8x8xf32> to vector<8x8xbf16>
    %c0_23 = arith.constant 0 : index
    %c1_24 = arith.constant 1 : index
    %c0_25 = arith.constant 0 : index
    %c0_26 = arith.constant 0 : index
    %34 = vector.load %arg6[%c0_23, %c1_24, %c0_25, %c0_26] : memref<1x4x8x8xbf16, #tpu.memory_space<vmem>>, vector<1x1x8x8xbf16>
    %35 = vector.shape_cast %34 : vector<1x1x8x8xbf16> to vector<8x8xbf16>
    %36 = vector.shape_cast %33 : vector<8x8xbf16> to vector<1x1x8x8xbf16>
    tpu.vector_store %arg6[%c0_23, %c1_24, %c0_25, %c0_26], %36 {strides = array<i32>} : memref<1x4x8x8xbf16, #tpu.memory_space<vmem>>, vector<1x1x8x8xbf16>,
    %37 = vector.extract_strided_slice %6 {offsets = [0, 48], sizes = [8, 8], strides = [1, 1]} : vector<8x96xf32> to vector<8x8xf32>
    %38 = arith.truncf %37 : vector<8x8xf32> to vector<8x8xbf16>
    %c0_27 = arith.constant 0 : index
    %c2_28 = arith.constant 2 : index
    %c0_29 = arith.constant 0 : index
    %c0_30 = arith.constant 0 : index
    %39 = vector.load %arg6[%c0_27, %c2_28, %c0_29, %c0_30] : memref<1x4x8x8xbf16, #tpu.memory_space<vmem>>, vector<1x1x8x8xbf16>
    %40 = vector.shape_cast %39 : vector<1x1x8x8xbf16> to vector<8x8xbf16>
    %41 = vector.shape_cast %38 : vector<8x8xbf16> to vector<1x1x8x8xbf16>
    tpu.vector_store %arg6[%c0_27, %c2_28, %c0_29, %c0_30], %41 {strides = array<i32>} : memref<1x4x8x8xbf16, #tpu.memory_space<vmem>>, vector<1x1x8x8xbf16>,
    %42 = vector.extract_strided_slice %6 {offsets = [0, 56], sizes = [8, 8], strides = [1, 1]} : vector<8x96xf32> to vector<8x8xf32>
    %43 = arith.truncf %42 : vector<8x8xf32> to vector<8x8xbf16>
    %c0_31 = arith.constant 0 : index
    %c3_32 = arith.constant 3 : index
    %c0_33 = arith.constant 0 : index
    %c0_34 = arith.constant 0 : index
    %44 = vector.load %arg6[%c0_31, %c3_32, %c0_33, %c0_34] : memref<1x4x8x8xbf16, #tpu.memory_space<vmem>>, vector<1x1x8x8xbf16>
    %45 = vector.shape_cast %44 : vector<1x1x8x8xbf16> to vector<8x8xbf16>
    %46 = vector.shape_cast %43 : vector<8x8xbf16> to vector<1x1x8x8xbf16>
    tpu.vector_store %arg6[%c0_31, %c3_32, %c0_33, %c0_34], %46 {strides = array<i32>} : memref<1x4x8x8xbf16, #tpu.memory_space<vmem>>, vector<1x1x8x8xbf16>,
    %47 = vector.extract_strided_slice %6 {offsets = [0, 64], sizes = [8, 8], strides = [1, 1]} : vector<8x96xf32> to vector<8x8xf32>
    %48 = arith.truncf %47 : vector<8x8xf32> to vector<8x8xbf16>
    %c0_35 = arith.constant 0 : index
    %c0_36 = arith.constant 0 : index
    %c0_37 = arith.constant 0 : index
    %c0_38 = arith.constant 0 : index
    %49 = vector.load %arg7[%c0_35, %c0_36, %c0_37, %c0_38] : memref<1x4x8x8xbf16, #tpu.memory_space<vmem>>, vector<1x1x8x8xbf16>
    %50 = vector.shape_cast %49 : vector<1x1x8x8xbf16> to vector<8x8xbf16>
    %51 = vector.shape_cast %48 : vector<8x8xbf16> to vector<1x1x8x8xbf16>
    tpu.vector_store %arg7[%c0_35, %c0_36, %c0_37, %c0_38], %51 {strides = array<i32>} : memref<1x4x8x8xbf16, #tpu.memory_space<vmem>>, vector<1x1x8x8xbf16>,
    %52 = vector.extract_strided_slice %6 {offsets = [0, 72], sizes = [8, 8], strides = [1, 1]} : vector<8x96xf32> to vector<8x8xf32>
    %53 = arith.truncf %52 : vector<8x8xf32> to vector<8x8xbf16>
    %c0_39 = arith.constant 0 : index
    %c1_40 = arith.constant 1 : index
    %c0_41 = arith.constant 0 : index
    %c0_42 = arith.constant 0 : index
    %54 = vector.load %arg7[%c0_39, %c1_40, %c0_41, %c0_42] : memref<1x4x8x8xbf16, #tpu.memory_space<vmem>>, vector<1x1x8x8xbf16>
    %55 = vector.shape_cast %54 : vector<1x1x8x8xbf16> to vector<8x8xbf16>
    %56 = vector.shape_cast %53 : vector<8x8xbf16> to vector<1x1x8x8xbf16>
    tpu.vector_store %arg7[%c0_39, %c1_40, %c0_41, %c0_42], %56 {strides = array<i32>} : memref<1x4x8x8xbf16, #tpu.memory_space<vmem>>, vector<1x1x8x8xbf16>,
    %57 = vector.extract_strided_slice %6 {offsets = [0, 80], sizes = [8, 8], strides = [1, 1]} : vector<8x96xf32> to vector<8x8xf32>
    %58 = arith.truncf %57 : vector<8x8xf32> to vector<8x8xbf16>
    %c0_43 = arith.constant 0 : index
    %c2_44 = arith.constant 2 : index
    %c0_45 = arith.constant 0 : index
    %c0_46 = arith.constant 0 : index
    %59 = vector.load %arg7[%c0_43, %c2_44, %c0_45, %c0_46] : memref<1x4x8x8xbf16, #tpu.memory_space<vmem>>, vector<1x1x8x8xbf16>
    %60 = vector.shape_cast %59 : vector<1x1x8x8xbf16> to vector<8x8xbf16>
    %61 = vector.shape_cast %58 : vector<8x8xbf16> to vector<1x1x8x8xbf16>
    tpu.vector_store %arg7[%c0_43, %c2_44, %c0_45, %c0_46], %61 {strides = array<i32>} : memref<1x4x8x8xbf16, #tpu.memory_space<vmem>>, vector<1x1x8x8xbf16>,
    %62 = vector.extract_strided_slice %6 {offsets = [0, 88], sizes = [8, 8], strides = [1, 1]} : vector<8x96xf32> to vector<8x8xf32>
    %63 = arith.truncf %62 : vector<8x8xf32> to vector<8x8xbf16>
    %c0_47 = arith.constant 0 : index
    %c3_48 = arith.constant 3 : index
    %c0_49 = arith.constant 0 : index
    %c0_50 = arith.constant 0 : index
    %64 = vector.load %arg7[%c0_47, %c3_48, %c0_49, %c0_50] : memref<1x4x8x8xbf16, #tpu.memory_space<vmem>>, vector<1x1x8x8xbf16>
    %65 = vector.shape_cast %64 : vector<1x1x8x8xbf16> to vector<8x8xbf16>
    %66 = vector.shape_cast %63 : vector<8x8xbf16> to vector<1x1x8x8xbf16>
    tpu.vector_store %arg7[%c0_47, %c3_48, %c0_49, %c0_50], %66 {strides = array<i32>} : memref<1x4x8x8xbf16, #tpu.memory_space<vmem>>, vector<1x1x8x8xbf16>,
    return
  }
  func.func @transform_0(%arg0: i32, %arg1: i32) -> (i32, i32, i32) {
    %c0_i32 = arith.constant 0 : i32
    %c0_i32_0 = arith.constant 0 : i32
    return %arg0, %arg1, %c0_i32 : i32, i32, i32
  }
  func.func @transform_1(%arg0: i32, %arg1: i32) -> (i32, i32) {
    %c0_i32 = arith.constant 0 : i32
    %c0_i32_0 = arith.constant 0 : i32
    %c0_i32_1 = arith.constant 0 : i32
    return %c0_i32, %c0_i32_0 : i32, i32
  }
  func.func @transform_2(%arg0: i32, %arg1: i32) -> (i32, i32) {
    %c0_i32 = arith.constant 0 : i32
    %c0_i32_0 = arith.constant 0 : i32
    %c0_i32_1 = arith.constant 0 : i32
    return %c0_i32, %c0_i32_0 : i32, i32
  }
  func.func @transform_3(%arg0: i32, %arg1: i32) -> (i32, i32, i32, i32) {
    %c0_i32 = arith.constant 0 : i32
    %c0_i32_0 = arith.constant 0 : i32
    %c0_i32_1 = arith.constant 0 : i32
    return %arg0, %c0_i32, %arg1, %c0_i32_0 : i32, i32, i32, i32
  }
  func.func @transform_4(%arg0: i32, %arg1: i32) -> (i32, i32, i32, i32) {
    %c0_i32 = arith.constant 0 : i32
    %c0_i32_0 = arith.constant 0 : i32
    %c0_i32_1 = arith.constant 0 : i32
    return %arg0, %c0_i32, %arg1, %c0_i32_0 : i32, i32, i32, i32
  }
  func.func @transform_5(%arg0: i32, %arg1: i32) -> (i32, i32, i32, i32) {
    %c0_i32 = arith.constant 0 : i32
    %c0_i32_0 = arith.constant 0 : i32
    %c0_i32_1 = arith.constant 0 : i32
    return %arg0, %c0_i32, %arg1, %c0_i32_0 : i32, i32, i32, i32
  }
}

</mosaic_0001>

<llo_original>
// kernel: tpu_custom_call.1
$region0: #{tpu_custom_call.1}
  #allocation0 [shape = 'u32[]', space=smem, size = 0x4, offset = 0x4, fixed_abs, tag = 'smem constant byte address 0x4 - core index']
  #allocation1 [shape = 'u32[144,128]{1,0:T(1,128)}', space=vmem, size = 0x12000, scoped, tag = 'internal scratch']
  %s0 = inlined_call_operand.hbm [shape: bf16[2,8,32], index: 0, kind: input, shape index: {}]
  %s1 = inlined_call_operand.hbm [shape: bf16[32,96], index: 1, kind: input, shape index: {}]
  %s2 = inlined_call_operand.vmem [shape: f32[1,96], index: 2, kind: input, shape index: {}]
  %s3 = inlined_call_operand.hbm [shape: bf16[2,4,8,8], index: 3, kind: output, shape index: {0}]
  %s4 = inlined_call_operand.hbm [shape: bf16[2,4,8,8], index: 4, kind: output, shape index: {1}]
  %s5 = inlined_call_operand.hbm [shape: bf16[2,4,8,8], index: 5, kind: output, shape index: {2}]
  %6 = xla_tuple %s3, %s4, %s5
  %s7 = sld [smem:[#allocation0]]
  $region69: #{tpu_custom_call.1} parent=0
    _
  %s9 = ssub.s32 1, %s7
  %s10 = scalar_select 0, %s9, %s7
  $region1: #{tpu_custom_call.1} parent=0
    #allocation2 [shape = 'u8[4096]{0}', space=vmem, size = 0x1000, scoped, tag = 'input window, operand 0']
    #allocation3 [shape = 's32[2]{0}', space=sflag, size = 0x8, scoped, tag = 'scoped memory for tpu_custom_call.1']
    #allocation4 [shape = 's32[2]{0}', space=sflag, size = 0x8, scoped, tag = 'scoped memory for tpu_custom_call.1']
    #allocation5 [shape = 'u8[8192]{0}', space=vmem, size = 0x2000, scoped, tag = 'input window, operand 1, single buffered']
    #allocation6 [shape = 's32[1]{0}', space=sflag, size = 0x4, scoped, tag = 'scoped memory for tpu_custom_call.1']
    #allocation7 [shape = 'u8[16384]{0}', space=vmem, size = 0x4000, scoped, tag = 'output window, operand 0']
    #allocation8 [shape = 'u8[16384]{0}', space=vmem, size = 0x4000, scoped, tag = 'output window, operand 1']
    #allocation9 [shape = 's32[2]{0}', space=sflag, size = 0x8, scoped, tag = 'scoped memory for tpu_custom_call.1']
    #allocation10 [shape = 'u8[16384]{0}', space=vmem, size = 0x4000, scoped, tag = 'output window, operand 2']
    %11 = vsyncpa [#allocation3], 0
    %s12 = scalar_lea.sflag [#allocation3], 1
    %13 = vsyncpa %s12, 0
    %14 = vsyncpa [#allocation6], 0
    %15 = vsyncpa [#allocation4], 0
    %s16 = scalar_lea.sflag [#allocation4], 1
    %17 = vsyncpa %s16, 0
    %18 = vsyncpa [#allocation9], 0
    %s19 = scalar_lea.sflag [#allocation9], 1
    %20 = vsyncpa %s19, 0
    loop: start=0, step=1, limit=4
    $region2: #{tpu_custom_call.1} parent=1 // loop_pre_header
      _
    $region3: #{tpu_custom_call.1} parent=1 // loop_header
      %s22 = sphi 0, %s26
      %p23 = scmp.ge.s32.totalorder %s22, 4
      %s29 = sphi 0, %s41
      %s30 = sphi 0, %s37
      %s31 = sphi 0, %s29
      %s32 = sphi 0, %s30
      %s33 = sphi 0, %s31
      %s34 = sphi 0, %s32
      %s46 = sphi 0, %s48
      %s49 = sphi 0, %s46
      %s50 = sphi 0, %s49
      %s66 = sphi 0, %s50
      %s70 = sphi 0, %s70
      %s72 = sphi 0, %s70
      %s73 = sphi 0, %s72
      %s87 = sphi 0, %s73
      %s91 = sphi 0, %s91
      %s93 = sphi 0, %s91
      %s94 = sphi 0, %s93
      %s108 = sphi 0, %s94
      %s116 = sphi 0, %s118
      %s119 = sphi 0, %s116
      %s120 = sphi 0, %s119
      %s136 = sphi 0, %s120
      %s144 = sphi 0, %s146
      %s147 = sphi 0, %s144
      %s148 = sphi 0, %s147
      %s164 = sphi 0, %s148
      %s172 = sphi 0, %s174
      %s175 = sphi 0, %s172
      %s176 = sphi 0, %s175
      %s192 = sphi 0, %s176
    $region4: #{tpu_custom_call.1} parent=1 // loop_header_branch
      %25 = sbr.rel (%p23) target = $region8
    $region5: #{tpu_custom_call.1} parent=1 // loop_body
      %s27 = ssub.s32 %s22, 1
      %s28 = ssub.s32 %s22, 2
      %s35 = sadd.s32 1, %s30
      %p36 = scmp.ge.s32.totalorder %s35, 1
      %s37 = scalar_select %p36, 0, %s35
      %s38 = sadd.s32 1, %s29
      %s39 = scalar_select %p36, %s38, %s29
      %p40 = scmp.ge.s32.totalorder %s39, 2
      %s41 = scalar_select %p40, 0, %s39
      %s42 = ssub.s32 %s29, %s41
      %s43 = ssub.s32 %s30, %s37
      %s44 = sor.u32 %s42, %s43
      %p45 = scmp.eq.s32.totalorder %s44, 0
      %s47 = sadd.s32 %s46, 1
      %s48 = scalar_select %p45, %s46, %s47
      %p51 = pneg %p45
      %p52 = scmp.eq.s32.totalorder %s22, 1
      %p53 = por %p51, %p52
      %p54 = scmp.ne.s32.totalorder %s46, %s49
      %p55 = scmp.eq.s32.totalorder %s22, 0
      %p56 = por %p54, %p55
      %p57 = scmp.ne.s32.totalorder %s46, %s49
      %p58 = scmp.eq.s32.totalorder %s27, 1
      %p59 = por %p57, %p58
      %p60 = scmp.ne.s32.totalorder %s49, %s50
      %p61 = scmp.eq.s32.totalorder %s27, 0
      %p62 = por %p60, %p61
      %p63 = scmp.ne.s32.totalorder %s49, %s50
      %p64 = scmp.eq.s32.totalorder %s28, 1
      %p65 = por %p63, %p64
      %p67 = scmp.ne.s32.totalorder %s50, %s66
      %p68 = scmp.eq.s32.totalorder %s28, 0
      %p69 = por %p67, %p68
      %s71 = sadd.s32 %s70, 1
      %p74 = scmp.eq.s32.totalorder %s22, 1
      %p75 = scmp.ne.s32.totalorder %s70, %s72
      %p76 = scmp.eq.s32.totalorder %s22, 0
      %p77 = por %p75, %p76
      %p78 = scmp.ne.s32.totalorder %s70, %s72
      %p79 = scmp.eq.s32.totalorder %s27, 1
      %p80 = por %p78, %p79
      %p81 = scmp.ne.s32.totalorder %s72, %s73
      %p82 = scmp.eq.s32.totalorder %s27, 0
      %p83 = por %p81, %p82
      %p84 = scmp.ne.s32.totalorder %s72, %s73
      %p85 = scmp.eq.s32.totalorder %s28, 1
      %p86 = por %p84, %p85
      %p88 = scmp.ne.s32.totalorder %s73, %s87
      %p89 = scmp.eq.s32.totalorder %s28, 0
      %p90 = por %p88, %p89
      %s92 = sadd.s32 %s91, 1
      %p95 = scmp.eq.s32.totalorder %s22, 1
      %p96 = scmp.ne.s32.totalorder %s91, %s93
      %p97 = scmp.eq.s32.totalorder %s22, 0
      %p98 = por %p96, %p97
      %p99 = scmp.ne.s32.totalorder %s91, %s93
      %p100 = scmp.eq.s32.totalorder %s27, 1
      %p101 = por %p99, %p100
      %p102 = scmp.ne.s32.totalorder %s93, %s94
      %p103 = scmp.eq.s32.totalorder %s27, 0
      %p104 = por %p102, %p103
      %p105 = scmp.ne.s32.totalorder %s93, %s94
      %p106 = scmp.eq.s32.totalorder %s28, 1
      %p107 = por %p105, %p106
      %p109 = scmp.ne.s32.totalorder %s94, %s108
      %p110 = scmp.eq.s32.totalorder %s28, 0
      %p111 = por %p109, %p110
      %s112 = ssub.s32 %s29, %s41
      %s113 = ssub.s32 %s30, %s37
      %s114 = sor.u32 %s112, %s113
      %p115 = scmp.eq.s32.totalorder %s114, 0
      %s117 = sadd.s32 %s116, 1
      %s118 = scalar_select %p115, %s116, %s117
      %p121 = pneg %p115
      %p122 = scmp.eq.s32.totalorder %s22, 1
      %p123 = por %p121, %p122
      %p124 = scmp.ne.s32.totalorder %s116, %s119
      %p125 = scmp.eq.s32.totalorder %s22, 0
      %p126 = por %p124, %p125
      %p127 = scmp.ne.s32.totalorder %s116, %s119
      %p128 = scmp.eq.s32.totalorder %s27, 1
      %p129 = por %p127, %p128
      %p130 = scmp.ne.s32.totalorder %s119, %s120
      %p131 = scmp.eq.s32.totalorder %s27, 0
      %p132 = por %p130, %p131
      %p133 = scmp.ne.s32.totalorder %s119, %s120
      %p134 = scmp.eq.s32.totalorder %s28, 1
      %p135 = por %p133, %p134
      %p137 = scmp.ne.s32.totalorder %s120, %s136
      %p138 = scmp.eq.s32.totalorder %s28, 0
      %p139 = por %p137, %p138
      %s140 = ssub.s32 %s29, %s41
      %s141 = ssub.s32 %s30, %s37
      %s142 = sor.u32 %s140, %s141
      %p143 = scmp.eq.s32.totalorder %s142, 0
      %s145 = sadd.s32 %s144, 1
      %s146 = scalar_select %p143, %s144, %s145
      %p149 = pneg %p143
      %p150 = scmp.eq.s32.totalorder %s22, 1
      %p151 = por %p149, %p150
      %p152 = scmp.ne.s32.totalorder %s144, %s147
      %p153 = scmp.eq.s32.totalorder %s22, 0
      %p154 = por %p152, %p153
      %p155 = scmp.ne.s32.totalorder %s144, %s147
      %p156 = scmp.eq.s32.totalorder %s27, 1
      %p157 = por %p155, %p156
      %p158 = scmp.ne.s32.totalorder %s147, %s148
      %p159 = scmp.eq.s32.totalorder %s27, 0
      %p160 = por %p158, %p159
      %p161 = scmp.ne.s32.totalorder %s147, %s148
      %p162 = scmp.eq.s32.totalorder %s28, 1
      %p163 = por %p161, %p162
      %p165 = scmp.ne.s32.totalorder %s148, %s164
      %p166 = scmp.eq.s32.totalorder %s28, 0
      %p167 = por %p165, %p166
      %s168 = ssub.s32 %s29, %s41
      %s169 = ssub.s32 %s30, %s37
      %s170 = sor.u32 %s168, %s169
      %p171 = scmp.eq.s32.totalorder %s170, 0
      %s173 = sadd.s32 %s172, 1
      %s174 = scalar_select %p171, %s172, %s173
      %p177 = pneg %p171
      %p178 = scmp.eq.s32.totalorder %s22, 1
      %p179 = por %p177, %p178
      %p180 = scmp.ne.s32.totalorder %s172, %s175
      %p181 = scmp.eq.s32.totalorder %s22, 0
      %p182 = por %p180, %p181
      %p183 = scmp.ne.s32.totalorder %s172, %s175
      %p184 = scmp.eq.s32.totalorder %s27, 1
      %p185 = por %p183, %p184
      %p186 = scmp.ne.s32.totalorder %s175, %s176
      %p187 = scmp.eq.s32.totalorder %s27, 0
      %p188 = por %p186, %p187
      %p189 = scmp.ne.s32.totalorder %s175, %s176
      %p190 = scmp.eq.s32.totalorder %s28, 1
      %p191 = por %p189, %p190
      %p193 = scmp.ne.s32.totalorder %s176, %s192
      %p194 = scmp.eq.s32.totalorder %s28, 0
      %p195 = por %p193, %p194
      %p196 = scmp.le.s32.totalorder 1, %s22
      %p197 = scmp.lt.s32.totalorder %s22, 3
      %p198 = pnand %p196, %p197
      %p199 = pneg %p198
      // Predicated region
      $region9: #{tpu_custom_call.1} parent=5 // pred_check
        _
      $region10: #{tpu_custom_call.1} parent=5 // pred_check_branch
        %201 = sbr.rel (%p198) target = $region12
      $region11: #{tpu_custom_call.1} parent=5 // pred_region
        %s202 = ssub.s32 %s22, 1
        // Predicated region
        $region13: #{tpu_custom_call.1} parent=11 // pred_check
          %p203 = pneg %p83
        $region14: #{tpu_custom_call.1} parent=11 // pred_check_branch
          %205 = sbr.rel (%p203) target = $region16
        $region15: #{tpu_custom_call.1} parent=11 // pred_region
          %s207 = ssub.s32 256, 256
          %208 = vsyncadd [#allocation6], %s207
          %s209 = sshll.u32 [#allocation5], 4
          %s210 = int_to_ptr.vmem [resolvable:$true] %s209
          %215 = dma.hbm_to_vmem [thread:$0]  %s1, 256, %s210, [#allocation6], 64, 64, 4
        $region16: #{tpu_custom_call.1} parent=11 // pred_fallthru
          _
        // Predicated region
        $region17: #{tpu_custom_call.1} parent=11 // pred_check
          %p216 = pneg %p104
        $region18: #{tpu_custom_call.1} parent=11 // pred_check_branch
          %218 = sbr.rel (%p216) target = $region20
        $region19: #{tpu_custom_call.1} parent=11 // pred_region
          _
        $region20: #{tpu_custom_call.1} parent=11 // pred_fallthru
          _
      $region12: #{tpu_custom_call.1} parent=5 // pred_fallthru
        _
      %p219 = scmp.lt.s32.totalorder %s22, 2
      // Predicated region
      $region21: #{tpu_custom_call.1} parent=5 // pred_check
        %p220 = pneg %p219
      $region22: #{tpu_custom_call.1} parent=5 // pred_check_branch
        %222 = sbr.rel (%p220) target = $region24
      $region23: #{tpu_custom_call.1} parent=5 // pred_region
        // Predicated region
        $region25: #{tpu_custom_call.1} parent=23 // pred_check
          %p223 = pneg %p56
        $region26: #{tpu_custom_call.1} parent=23 // pred_check_branch
          %225 = sbr.rel (%p223) target = $region28
        $region27: #{tpu_custom_call.1} parent=23 // pred_region
          %s226 = sand.u32 %s46, 1
          %s227 = scalar_lea.sflag [#allocation3], %s226
          %s228 = sand.u32 %s46, 1
          %s229 = smul.addr %s228, 4
          %s230 = scalar_lea.vmem [#allocation2], %s229
          %s232 = ssub.s32 64, 64
          %233 = vsyncadd %s227, %s232
          %s234 = sadd.s32 %s30, %s29
          %s235 = smul.addr %s234, 64
          %s236 = scalar_lea.hbm %s0, %s235
          %s238 = sshll.u32 %s230, 4
          %s239 = int_to_ptr.vmem [resolvable:$true] %s238
          %241 = dma.hbm_to_vmem [thread:$0]  %s236, 64, %s239, %s227
        $region28: #{tpu_custom_call.1} parent=23 // pred_fallthru
          _
      $region24: #{tpu_custom_call.1} parent=5 // pred_fallthru
        _
      %p242 = scmp.le.s32.totalorder 1, %s22
      %p243 = scmp.lt.s32.totalorder %s22, 3
      %p244 = pnand %p242, %p243
      %p245 = pneg %p244
      // Predicated region
      $region29: #{tpu_custom_call.1} parent=5 // pred_check
        _
      $region30: #{tpu_custom_call.1} parent=5 // pred_check_branch
        %247 = sbr.rel (%p244) target = $region32
      $region31: #{tpu_custom_call.1} parent=5 // pred_region
        %s248 = ssub.s32 %s22, 1
        %s249 = sand.u32 %s49, 1
        %s250 = scalar_lea.sflag [#allocation3], %s249
        %s251 = sand.u32 %s49, 1
        %s252 = smul.addr %s251, 4
        %s253 = scalar_lea.vmem [#allocation2], %s252
        // Predicated region
        $region33: #{tpu_custom_call.1} parent=31 // pred_check
          %p254 = pneg %p62
        $region34: #{tpu_custom_call.1} parent=31 // pred_check_branch
          %256 = sbr.rel (%p254) target = $region36
        $region35: #{tpu_custom_call.1} parent=31 // pred_region
          %257 = dma.done %s250, 64
        $region36: #{tpu_custom_call.1} parent=31 // pred_fallthru
          _
        // Predicated region
        $region37: #{tpu_custom_call.1} parent=31 // pred_check
          %p258 = pneg %p83
        $region38: #{tpu_custom_call.1} parent=31 // pred_check_branch
          %260 = sbr.rel (%p258) target = $region40
        $region39: #{tpu_custom_call.1} parent=31 // pred_region
          %261 = dma.done [#allocation6], 256
        $region40: #{tpu_custom_call.1} parent=31 // pred_fallthru
          _
        %s262 = sand.u32 %s49, 1
        %s263 = scalar_lea.sflag [#allocation3], %s262
        %s264 = sand.u32 %s49, 1
        %s265 = smul.addr %s264, 4
        %s266 = scalar_lea.vmem [#allocation2], %s265
        %p267 = pneg %p62
        %p268 = pneg %p59
        %p269 = pneg %p83
        %p270 = pneg %p80
        %p271 = pneg %p104
        %p272 = pneg %p101
        %p273 = pneg %p132
        %p274 = pneg %p129
        %s275 = sand.u32 %s119, 1
        %s276 = scalar_lea.sflag [#allocation4], %s275
        %s277 = sand.u32 %s119, 1
        %s278 = smul.addr %s277, 16
        %s279 = scalar_lea.vmem [#allocation7], %s278
        %p280 = pneg %p160
        %p281 = pneg %p157
        %s282 = sand.u32 %s27, 1
        %s283 = scalar_lea.sflag [#allocation9], %s282
        %s284 = sand.u32 %s147, 1
        %s285 = smul.addr %s284, 16
        %s286 = scalar_lea.vmem [#allocation8], %s285
        %p287 = pneg %p188
        %p288 = pneg %p185
        %s289 = sand.u32 %s27, 1
        %s290 = scalar_lea.sflag [#allocation9], %s289
        %s291 = sand.u32 %s175, 1
        %s292 = smul.addr %s291, 16
        %s293 = scalar_lea.vmem [#allocation10], %s292
        %v295 = vld [vmem:[%s253] sm:$0xf]
        %v296 = vld [vmem:[#allocation5] sm:$0xf]
        %v297 = vld [vmem:[#allocation5 + $0x4] sm:$0xf]
        %v298 = vld [vmem:[#allocation5 + $0x8] sm:$0xf]
        %v299 = vld [vmem:[#allocation5 + $0xc] sm:$0xf]
        %v300 = vld [vmem:[%s2] sm:$0x1]
        %v302 = vlaneseq
        %v303 = vshrl.u32 %v302, 7
        %v304 = vsub.s32 0, %v303
        %v305 = vrot.slane %v300, %v304
        %v311 = vunpack.c.l.b16 %v296
        %v312 = vunpack.c.l.b16 %v297
        %v313 = vunpack.c.l.b16 %v298
        %v314 = vunpack.c.l.b16 %v299
        %v315 = vpack.c.b16 %v312, %v311
        %v316 = vpack.c.b16 %v314, %v313
        %vm319 = vcmask 261120
        %v321 = vsel %vm319, %v295, 0
        %323 = vmatprep.subr.bf16.mxu0 0
        %324 = vmatpush1.bf16.msra.mxu0 0
        %325 = vmatprep.subr.bf16.mxu0 0
        %326 = vmatpush1.bf16.msra.mxu0 0
        %327 = vmatprep.subr.bf16.mxu0 0
        %328 = vmatpush1.bf16.msra.mxu0 0
        %329 = vmatprep.subr.bf16.mxu0 0
        %330 = vmatpush1.bf16.msra.mxu0 0
        %331 = vmatprep.subr.bf16.mxu0 0
        %332 = vmatpush1.bf16.msra.mxu0 0
        %333 = vmatprep.subr.bf16.mxu0 0
        %334 = vmatpush1.bf16.msra.mxu0 0
        %335 = vmatprep.subr.bf16.mxu0 0
        %336 = vmatpush1.bf16.msra.mxu0 %v316
        %337 = vmatprep.subr.bf16.mxu0 0
        %338 = vmatpush1.bf16.msra.mxu0 %v315
        %339 = vmatprep.subr.bf16.mxu0 0
        %340 = vmatpush2.bf16.msra.mxu0 0
        %341 = vmatprep.subr.bf16.mxu0 0
        %342 = vmatpush2.bf16.msra.mxu0 0
        %343 = vmatprep.subr.bf16.mxu0 0
        %344 = vmatpush2.bf16.msra.mxu0 0
        %345 = vmatprep.subr.bf16.mxu0 0
        %346 = vmatpush2.bf16.msra.mxu0 0
        %347 = vmatprep.subr.bf16.mxu0 0
        %348 = vmatpush2.bf16.msra.mxu0 0
        %349 = vmatprep.subr.bf16.mxu0 0
        %350 = vmatpush2.bf16.msra.mxu0 0
        %351 = vmatprep.subr.bf16.mxu0 0
        %352 = vmatpush2.bf16.msra.mxu0 0
        %353 = vmatprep.subr.bf16.mxu0 0
        %354 = vmatpush2.bf16.msra.mxu0 0
        %355 = vmatprep.mubr.bf16.mxu0 0
        %356 = vmatmul.mubr.bf16.gmra.mxu0 %v321
        %v357 = vpop.f32.mrf.mxu0
        %v358 = vadd.f32 %v305, %v357
        %v359 = vpop.f32.mrf.mxu0
        %v360 = vpop.f32.mrf.mxu0
        %v361 = vpop.f32.mrf.mxu0
        %362 = vdwg.mxu0
        %v363 = vpack.c.bf16 %v358, %v358
        %vm364 = vcmask 60416
        %365 = vst.msk [vmem:[%s279] sm:$0xf] %vm364, %v363
        %v367 = vunpack.c.l.b16 %v363
        %v368 = vpack.c.b16 %v367, %v367
        %369 = vrot.lane.b32.xlu0 %v368, 120
        %v370 = vpop.permute.xlu0 %369
        %s372 = scalar_lea.vmem %s279, 4 [#allocation7]
        %373 = vst.msk [vmem:[%s372] sm:$0xf] %vm364, %v370
        %374 = vrot.lane.b32.xlu0 %v368, 112
        %v375 = vpop.permute.xlu0 %374
        %s377 = scalar_lea.vmem %s279, 8 [#allocation7]
        %378 = vst.msk [vmem:[%s377] sm:$0xf] %vm364, %v375
        %379 = vrot.lane.b32.xlu0 %v368, 104
        %v380 = vpop.permute.xlu0 %379
        %s382 = scalar_lea.vmem %s279, 12 [#allocation7]
        %383 = vst.msk [vmem:[%s382] sm:$0xf] %vm364, %v380
        %384 = vrot.lane.b32.xlu0 %v368, 96
        %v385 = vpop.permute.xlu0 %384
        %387 = vst.msk [vmem:[%s286] sm:$0xf] %vm364, %v385
        %388 = vrot.lane.b32.xlu0 %v368, 88
        %v389 = vpop.permute.xlu0 %388
        %s391 = scalar_lea.vmem %s286, 4 [#allocation8]
        %392 = vst.msk [vmem:[%s391] sm:$0xf] %vm364, %v389
        %393 = vrot.lane.b32.xlu0 %v368, 80
        %v394 = vpop.permute.xlu0 %393
        %s396 = scalar_lea.vmem %s286, 8 [#allocation8]
        %397 = vst.msk [vmem:[%s396] sm:$0xf] %vm364, %v394
        %398 = vrot.lane.b32.xlu0 %v368, 72
        %v399 = vpop.permute.xlu0 %398
        %s401 = scalar_lea.vmem %s286, 12 [#allocation8]
        %402 = vst.msk [vmem:[%s401] sm:$0xf] %vm364, %v399
        %403 = vrot.lane.b32.xlu0 %v368, 64
        %v404 = vpop.permute.xlu0 %403
        %406 = vst.msk [vmem:[%s293] sm:$0xf] %vm364, %v404
        %407 = vrot.lane.b32.xlu0 %v368, 56
        %v408 = vpop.permute.xlu0 %407
        %s410 = scalar_lea.vmem %s293, 4 [#allocation10]
        %411 = vst.msk [vmem:[%s410] sm:$0xf] %vm364, %v408
        %412 = vrot.lane.b32.xlu0 %v368, 48
        %v413 = vpop.permute.xlu0 %412
        %s415 = scalar_lea.vmem %s293, 8 [#allocation10]
        %416 = vst.msk [vmem:[%s415] sm:$0xf] %vm364, %v413
        %417 = vrot.lane.b32.xlu0 %v368, 40
        %v418 = vpop.permute.xlu0 %417
        %s420 = scalar_lea.vmem %s293, 12 [#allocation10]
        %421 = vst.msk [vmem:[%s420] sm:$0xf] %vm364, %v418
        %s422 = sand.u32 %s119, 1
        %s423 = scalar_lea.sflag [#allocation4], %s422
        %s424 = sand.u32 %s119, 1
        %s425 = smul.addr %s424, 16
        %s426 = scalar_lea.vmem [#allocation7], %s425
        %s427 = sand.u32 %s27, 1
        %s428 = scalar_lea.sflag [#allocation9], %s427
        %s429 = sand.u32 %s147, 1
        %s430 = smul.addr %s429, 16
        %s431 = scalar_lea.vmem [#allocation8], %s430
        %s432 = sand.u32 %s27, 1
        %s433 = scalar_lea.sflag [#allocation9], %s432
        %s434 = sand.u32 %s175, 1
        %s435 = smul.addr %s434, 16
        %s436 = scalar_lea.vmem [#allocation10], %s435
        // Predicated region
        $region41: #{tpu_custom_call.1} parent=31 // pred_check
          %p437 = pneg %p129
        $region42: #{tpu_custom_call.1} parent=31 // pred_check_branch
          %439 = sbr.rel (%p437) target = $region44
        $region43: #{tpu_custom_call.1} parent=31 // pred_region
          %s441 = ssub.s32 256, 256
          %442 = vsyncadd %s423, %s441
          %s443 = smul.addr %s31, 4
          %s444 = sadd.s32 %s32, %s443
          %s445 = smul.addr %s444, 64
          %s446 = scalar_lea.hbm %s3, %s445
          %s447 = sshll.u32 %s426, 4
          %s448 = int_to_ptr.vmem [resolvable:$true] %s447
          %453 = dma.vmem_to_hbm [thread:$0]  %s448, 256, %s446, %s423, 64, 64, 4
        $region44: #{tpu_custom_call.1} parent=31 // pred_fallthru
          _
        // Predicated region
        $region45: #{tpu_custom_call.1} parent=31 // pred_check
          %p454 = pneg %p157
        $region46: #{tpu_custom_call.1} parent=31 // pred_check_branch
          %456 = sbr.rel (%p454) target = $region48
        $region47: #{tpu_custom_call.1} parent=31 // pred_region
          %s458 = ssub.s32 256, 256
          %459 = vsyncadd %s428, %s458
          %s460 = smul.addr %s31, 4
          %s461 = sadd.s32 %s32, %s460
          %s462 = smul.addr %s461, 64
          %s463 = scalar_lea.hbm %s4, %s462
          %s464 = sshll.u32 %s431, 4
          %s465 = int_to_ptr.vmem [resolvable:$true] %s464
          %470 = dma.vmem_to_hbm [thread:$0]  %s465, 256, %s463, %s428, 64, 64, 4
        $region48: #{tpu_custom_call.1} parent=31 // pred_fallthru
          _
        // Predicated region
        $region49: #{tpu_custom_call.1} parent=31 // pred_check
          %p471 = pneg %p185
        $region50: #{tpu_custom_call.1} parent=31 // pred_check_branch
          %473 = sbr.rel (%p471) target = $region52
        $region51: #{tpu_custom_call.1} parent=31 // pred_region
          %s475 = ssub.s32 256, 256
          %476 = vsyncadd %s433, %s475
          %s477 = smul.addr %s31, 4
          %s478 = sadd.s32 %s32, %s477
          %s479 = smul.addr %s478, 64
          %s480 = scalar_lea.hbm %s5, %s479
          %s481 = sshll.u32 %s436, 4
          %s482 = int_to_ptr.vmem [resolvable:$true] %s481
          %487 = dma.vmem_to_hbm [thread:$0]  %s482, 256, %s480, %s433, 64, 64, 4
        $region52: #{tpu_custom_call.1} parent=31 // pred_fallthru
          _
      $region32: #{tpu_custom_call.1} parent=5 // pred_fallthru
        _
      %p488 = scmp.le.s32.totalorder 2, %s22
      // Predicated region
      $region53: #{tpu_custom_call.1} parent=5 // pred_check
        %p489 = pneg %p488
      $region54: #{tpu_custom_call.1} parent=5 // pred_check_branch
        %491 = sbr.rel (%p489) target = $region56
      $region55: #{tpu_custom_call.1} parent=5 // pred_region
        %s492 = ssub.s32 %s22, 2
        // Predicated region
        $region57: #{tpu_custom_call.1} parent=55 // pred_check
          %p493 = pneg %p135
        $region58: #{tpu_custom_call.1} parent=55 // pred_check_branch
          %495 = sbr.rel (%p493) target = $region60
        $region59: #{tpu_custom_call.1} parent=55 // pred_region
          %s496 = sand.u32 %s120, 1
          %s497 = scalar_lea.sflag [#allocation4], %s496
          %s498 = sand.u32 %s120, 1
          %s499 = smul.addr %s498, 16
          %s500 = scalar_lea.vmem [#allocation7], %s499
          %501 = dma.done %s497, 256
        $region60: #{tpu_custom_call.1} parent=55 // pred_fallthru
          _
        // Predicated region
        $region61: #{tpu_custom_call.1} parent=55 // pred_check
          %p502 = pneg %p163
        $region62: #{tpu_custom_call.1} parent=55 // pred_check_branch
          %504 = sbr.rel (%p502) target = $region64
        $region63: #{tpu_custom_call.1} parent=55 // pred_region
          %s505 = sand.u32 %s28, 1
          %s506 = scalar_lea.sflag [#allocation9], %s505
          %s507 = sand.u32 %s148, 1
          %s508 = smul.addr %s507, 16
          %s509 = scalar_lea.vmem [#allocation8], %s508
          %510 = dma.done %s506, 256
        $region64: #{tpu_custom_call.1} parent=55 // pred_fallthru
          _
        // Predicated region
        $region65: #{tpu_custom_call.1} parent=55 // pred_check
          %p511 = pneg %p191
        $region66: #{tpu_custom_call.1} parent=55 // pred_check_branch
          %513 = sbr.rel (%p511) target = $region68
        $region67: #{tpu_custom_call.1} parent=55 // pred_region
          %s514 = sand.u32 %s28, 1
          %s515 = scalar_lea.sflag [#allocation9], %s514
          %s516 = sand.u32 %s176, 1
          %s517 = smul.addr %s516, 16
          %s518 = scalar_lea.vmem [#allocation10], %s517
          %519 = dma.done %s515, 256
        $region68: #{tpu_custom_call.1} parent=55 // pred_fallthru
          _
      $region56: #{tpu_custom_call.1} parent=5 // pred_fallthru
        _
    $region6: #{tpu_custom_call.1} parent=1 // loop_footer
      %s26 = sadd.s32 1, %s22
    $region7: #{tpu_custom_call.1} parent=1 // loop_footer_branch
      %21 = sbr.rel target = $region3
    $region8: #{tpu_custom_call.1} parent=1 // loop_exit
      _
    %520 = vsyncpa [#allocation3], 1
    %s521 = scalar_lea.sflag [#allocation3], 1
    %522 = vsyncpa %s521, 1
    %523 = vsyncpa [#allocation6], 1
    %524 = vsyncpa [#allocation4], 1
    %s525 = scalar_lea.sflag [#allocation4], 1
    %526 = vsyncpa %s525, 1
    %527 = vsyncpa [#allocation9], 1
    %s528 = scalar_lea.sflag [#allocation9], 1
    %529 = vsyncpa %s528, 1

</llo_original>
